<compile_context>
chip_gen: v7x
topology: tpu7x:2x2x1
jax: 0.10.0
libtpu: 0.0.40
codegen_flags: <defaults>
</compile_context>

<pallas_src>
import jax
import jax.numpy as jnp
from jax.experimental import pallas as pl
from jax.experimental.pallas import tpu as pltpu

EPS = 1e-5  # nn.BatchNorm1d default


def resblock_kernel(x_ref, w_ref, gamma_ref, beta_ref, o_ref):
    """x_ref: (N, H); w_ref: (L, H, H) stored (in, out); gamma/beta: (1, H); o_ref: (N, H)."""
    x = x_ref[...]
    gamma = gamma_ref[...]
    beta = beta_ref[...]
    inv_n = 1.0 / x.shape[0]

    h = x
    # Statically unrolled over the 3 layers: activation stays in vregs, the whole
    # (L, H, H) weight stack is already VMEM-resident.
    for l in range(w_ref.shape[0]):
        # Linear (bias is identically zero in the module; training-mode BN would
        # cancel a per-feature bias exactly anyway).
        h = jnp.dot(h, w_ref[l], preferred_element_type=jnp.float32)

        # BatchNorm1d training-mode forward: batch statistics, biased variance.
        # Two-pass (centered) variance -- numerically safe and matches the reference.
        mean = jnp.sum(h, axis=0, keepdims=True) * inv_n
        c = h - mean
        var = jnp.sum(c * c, axis=0, keepdims=True) * inv_n
        scale = gamma * jax.lax.rsqrt(var + EPS)  # fold normalize + affine scale
        h = c * scale + beta

        # SiLU; sigmoid via the exact tanh identity (single EUP transcendental).
        h = h * (0.5 + 0.5 * jnp.tanh(0.5 * h))

    # Residual add.
    o_ref[...] = (x + h).astype(o_ref.dtype)


def resblock_forward(x, w_stacked, gamma, beta):
    """x: (N, H) f32; w_stacked: (L, H, H) stored (in, out) so y = h @ W; gamma/beta: (1, H)."""
    N, H = x.shape
    # VMEM budget (f32): x + out = 2*N*H*4, weights = L*H*H*4, gamma/beta = 2*H*4.
    # At N=8, H=128 this is ~0.2 MiB -- far below every generation's scoped-VMEM
    # default, so no vmem_limit_bytes override is needed.
    return pl.pallas_call(
        resblock_kernel,
        out_shape=jax.ShapeDtypeStruct((N, H), x.dtype),
        in_specs=[
            pl.BlockSpec(memory_space=pltpu.MemorySpace.VMEM),  # x (whole array resident)
            pl.BlockSpec(memory_space=pltpu.MemorySpace.VMEM),  # stacked weights (L,H,H)
            pl.BlockSpec(memory_space=pltpu.MemorySpace.VMEM),  # gamma
            pl.BlockSpec(memory_space=pltpu.MemorySpace.VMEM),  # beta
        ],
        out_specs=pl.BlockSpec(memory_space=pltpu.MemorySpace.VMEM),
    )(x, w_stacked, gamma, beta)


def resblock_reference(x, w_stacked, gamma, beta):
    """Pure-JAX reference mirroring the PyTorch training-mode forward.
    HIGHEST-precision matmuls so it is comparable with the kernel's full-f32 MXU dot."""
    def bn_silu(h):
        m = jnp.mean(h, axis=0, keepdims=True)
        v = jnp.mean((h - m) ** 2, axis=0, keepdims=True)  # biased variance, like PyTorch
        h = (h - m) * jax.lax.rsqrt(v + EPS) * gamma + beta
        return h * jax.nn.sigmoid(h)

    h = x
    for l in range(w_stacked.shape[0]):
        h = jnp.dot(h, w_stacked[l], precision=jax.lax.Precision.HIGHEST)
        h = bn_silu(h)
    return x + h


if __name__ == "__main__":
    N, H = 8, 128  # batch, hidden_channels
    key = jax.random.PRNGKey(0)
    kx, kw = jax.random.split(key)

    x = jax.random.normal(kx, (N, H), dtype=jnp.float32)

    # Deterministic synthetic init (stand-in for glorot_orthogonal).  Weights are
    # stored (in, out) so the kernel computes h @ W (i.e. pass W.T of the PyTorch
    # nn.Linear weight).  Linear biases are zeroed by the module's reset_parameters
    # and are therefore omitted entirely.
    scale = jnp.sqrt(2.0 / (H + H))
    w_stacked = scale * jax.random.normal(kw, (3, H, H), dtype=jnp.float32)

    gamma = jnp.ones((1, H), jnp.float32)   # BatchNorm1d default affine init
    beta = jnp.zeros((1, H), jnp.float32)

    out = jax.block_until_ready(resblock_forward(x, w_stacked, gamma, beta))

    ref = resblock_reference(x, w_stacked, gamma, beta)
    assert out.shape == (N, H) and out.dtype == jnp.float32
    # Tolerance covers EUP tanh / MXU f32-emulation vs XLA HIGHEST-precision rounding.
    assert jnp.allclose(out, ref, atol=1e-3, rtol=1e-3), "mismatch vs JAX reference"

    print("KERNEL_OK")
</pallas_src>

<mosaic_0001>
module attributes {stable_mosaic.version = 11 : i64} {
  func.func @resblock_kernel(%arg0: memref<8x128xf32, #tpu.memory_space<vmem>>, %arg1: memref<3x128x128xf32, #tpu.memory_space<vmem>>, %arg2: memref<1x128xf32, #tpu.memory_space<vmem>>, %arg3: memref<1x128xf32, #tpu.memory_space<vmem>>, %arg4: memref<8x128xf32, #tpu.memory_space<vmem>>) attributes {dimension_semantics = [], scalar_prefetch = 0 : i64, scratch_operands = 0 : i64, tpu.core_type = #tpu.core_type<tc>} {
    %c0 = arith.constant 0 : index
    %c0_0 = arith.constant 0 : index
    %0 = vector.load %arg0[%c0, %c0_0] : memref<8x128xf32, #tpu.memory_space<vmem>>, vector<8x128xf32>
    %c0_1 = arith.constant 0 : index
    %c0_2 = arith.constant 0 : index
    %1 = vector.load %arg2[%c0_1, %c0_2] : memref<1x128xf32, #tpu.memory_space<vmem>>, vector<1x128xf32>
    %c0_3 = arith.constant 0 : index
    %c0_4 = arith.constant 0 : index
    %2 = vector.load %arg3[%c0_3, %c0_4] : memref<1x128xf32, #tpu.memory_space<vmem>>, vector<1x128xf32>
    %c0_5 = arith.constant 0 : index
    %c0_6 = arith.constant 0 : index
    %c0_7 = arith.constant 0 : index
    %3 = vector.load %arg1[%c0_5, %c0_6, %c0_7] : memref<3x128x128xf32, #tpu.memory_space<vmem>>, vector<1x128x128xf32>
    %4 = vector.shape_cast %3 : vector<1x128x128xf32> to vector<128x128xf32>
    %cst = arith.constant dense<0.000000e+00> : vector<8x128xf32>
    %5 = tpu.matmul %0, %4, %cst {dimension_numbers = #tpu.dot_dimension_numbers<[1], [0], [0], [1], [0, 0, 1, 1], [], []>} : vector<8x128xf32>, vector<128x128xf32>, vector<8x128xf32> -> vector<8x128xf32>
    %cst_8 = arith.constant dense<0.000000e+00> : vector<128xf32>
    %6 = vector.multi_reduction <add>, %5, %cst_8 [0] : vector<8x128xf32> to vector<128xf32>
    %7 = vector.shape_cast %6 : vector<128xf32> to vector<1x128xf32>
    %cst_9 = arith.constant 1.250000e-01 : f32
    %8 = vector.broadcast %cst_9 : f32 to vector<1x128xf32>
    %9 = arith.mulf %7, %8 : vector<1x128xf32>
    %10 = vector.broadcast %9 : vector<1x128xf32> to vector<8x128xf32>
    %11 = arith.subf %5, %10 : vector<8x128xf32>
    %12 = arith.mulf %11, %11 : vector<8x128xf32>
    %cst_10 = arith.constant dense<0.000000e+00> : vector<128xf32>
    %13 = vector.multi_reduction <add>, %12, %cst_10 [0] : vector<8x128xf32> to vector<128xf32>
    %14 = vector.shape_cast %13 : vector<128xf32> to vector<1x128xf32>
    %cst_11 = arith.constant 1.250000e-01 : f32
    %15 = vector.broadcast %cst_11 : f32 to vector<1x128xf32>
    %16 = arith.mulf %14, %15 : vector<1x128xf32>
    %cst_12 = arith.constant 9.99999974E-6 : f32
    %17 = vector.broadcast %cst_12 : f32 to vector<1x128xf32>
    %18 = arith.addf %16, %17 : vector<1x128xf32>
    %19 = math.rsqrt %18 : vector<1x128xf32>
    %20 = arith.mulf %1, %19 : vector<1x128xf32>
    %21 = vector.broadcast %20 : vector<1x128xf32> to vector<8x128xf32>
    %22 = arith.mulf %11, %21 : vector<8x128xf32>
    %23 = vector.broadcast %2 : vector<1x128xf32> to vector<8x128xf32>
    %24 = arith.addf %22, %23 : vector<8x128xf32>
    %cst_13 = arith.constant 5.000000e-01 : f32
    %25 = vector.broadcast %cst_13 : f32 to vector<8x128xf32>
    %26 = arith.mulf %25, %24 : vector<8x128xf32>
    %27 = math.tanh %26 : vector<8x128xf32>
    %cst_14 = arith.constant 5.000000e-01 : f32
    %28 = vector.broadcast %cst_14 : f32 to vector<8x128xf32>
    %29 = arith.mulf %28, %27 : vector<8x128xf32>
    %cst_15 = arith.constant 5.000000e-01 : f32
    %30 = vector.broadcast %cst_15 : f32 to vector<8x128xf32>
    %31 = arith.addf %30, %29 : vector<8x128xf32>
    %32 = arith.mulf %24, %31 : vector<8x128xf32>
    %c1 = arith.constant 1 : index
    %c0_16 = arith.constant 0 : index
    %c0_17 = arith.constant 0 : index
    %33 = vector.load %arg1[%c1, %c0_16, %c0_17] : memref<3x128x128xf32, #tpu.memory_space<vmem>>, vector<1x128x128xf32>
    %34 = vector.shape_cast %33 : vector<1x128x128xf32> to vector<128x128xf32>
    %cst_18 = arith.constant dense<0.000000e+00> : vector<8x128xf32>
    %35 = tpu.matmul %32, %34, %cst_18 {dimension_numbers = #tpu.dot_dimension_numbers<[1], [0], [0], [1], [0, 0, 1, 1], [], []>} : vector<8x128xf32>, vector<128x128xf32>, vector<8x128xf32> -> vector<8x128xf32>
    %cst_19 = arith.constant dense<0.000000e+00> : vector<128xf32>
    %36 = vector.multi_reduction <add>, %35, %cst_19 [0] : vector<8x128xf32> to vector<128xf32>
    %37 = vector.shape_cast %36 : vector<128xf32> to vector<1x128xf32>
    %cst_20 = arith.constant 1.250000e-01 : f32
    %38 = vector.broadcast %cst_20 : f32 to vector<1x128xf32>
    %39 = arith.mulf %37, %38 : vector<1x128xf32>
    %40 = vector.broadcast %39 : vector<1x128xf32> to vector<8x128xf32>
    %41 = arith.subf %35, %40 : vector<8x128xf32>
    %42 = arith.mulf %41, %41 : vector<8x128xf32>
    %cst_21 = arith.constant dense<0.000000e+00> : vector<128xf32>
    %43 = vector.multi_reduction <add>, %42, %cst_21 [0] : vector<8x128xf32> to vector<128xf32>
    %44 = vector.shape_cast %43 : vector<128xf32> to vector<1x128xf32>
    %cst_22 = arith.constant 1.250000e-01 : f32
    %45 = vector.broadcast %cst_22 : f32 to vector<1x128xf32>
    %46 = arith.mulf %44, %45 : vector<1x128xf32>
    %cst_23 = arith.constant 9.99999974E-6 : f32
    %47 = vector.broadcast %cst_23 : f32 to vector<1x128xf32>
    %48 = arith.addf %46, %47 : vector<1x128xf32>
    %49 = math.rsqrt %48 : vector<1x128xf32>
    %50 = arith.mulf %1, %49 : vector<1x128xf32>
    %51 = vector.broadcast %50 : vector<1x128xf32> to vector<8x128xf32>
    %52 = arith.mulf %41, %51 : vector<8x128xf32>
    %53 = vector.broadcast %2 : vector<1x128xf32> to vector<8x128xf32>
    %54 = arith.addf %52, %53 : vector<8x128xf32>
    %cst_24 = arith.constant 5.000000e-01 : f32
    %55 = vector.broadcast %cst_24 : f32 to vector<8x128xf32>
    %56 = arith.mulf %55, %54 : vector<8x128xf32>
    %57 = math.tanh %56 : vector<8x128xf32>
    %cst_25 = arith.constant 5.000000e-01 : f32
    %58 = vector.broadcast %cst_25 : f32 to vector<8x128xf32>
    %59 = arith.mulf %58, %57 : vector<8x128xf32>
    %cst_26 = arith.constant 5.000000e-01 : f32
    %60 = vector.broadcast %cst_26 : f32 to vector<8x128xf32>
    %61 = arith.addf %60, %59 : vector<8x128xf32>
    %62 = arith.mulf %54, %61 : vector<8x128xf32>
    %c2 = arith.constant 2 : index
    %c0_27 = arith.constant 0 : index
    %c0_28 = arith.constant 0 : index
    %63 = vector.load %arg1[%c2, %c0_27, %c0_28] : memref<3x128x128xf32, #tpu.memory_space<vmem>>, vector<1x128x128xf32>
    %64 = vector.shape_cast %63 : vector<1x128x128xf32> to vector<128x128xf32>
    %cst_29 = arith.constant dense<0.000000e+00> : vector<8x128xf32>
    %65 = tpu.matmul %62, %64, %cst_29 {dimension_numbers = #tpu.dot_dimension_numbers<[1], [0], [0], [1], [0, 0, 1, 1], [], []>} : vector<8x128xf32>, vector<128x128xf32>, vector<8x128xf32> -> vector<8x128xf32>
    %cst_30 = arith.constant dense<0.000000e+00> : vector<128xf32>
    %66 = vector.multi_reduction <add>, %65, %cst_30 [0] : vector<8x128xf32> to vector<128xf32>
    %67 = vector.shape_cast %66 : vector<128xf32> to vector<1x128xf32>
    %cst_31 = arith.constant 1.250000e-01 : f32
    %68 = vector.broadcast %cst_31 : f32 to vector<1x128xf32>
    %69 = arith.mulf %67, %68 : vector<1x128xf32>
    %70 = vector.broadcast %69 : vector<1x128xf32> to vector<8x128xf32>
    %71 = arith.subf %65, %70 : vector<8x128xf32>
    %72 = arith.mulf %71, %71 : vector<8x128xf32>
    %cst_32 = arith.constant dense<0.000000e+00> : vector<128xf32>
    %73 = vector.multi_reduction <add>, %72, %cst_32 [0] : vector<8x128xf32> to vector<128xf32>
    %74 = vector.shape_cast %73 : vector<128xf32> to vector<1x128xf32>
    %cst_33 = arith.constant 1.250000e-01 : f32
    %75 = vector.broadcast %cst_33 : f32 to vector<1x128xf32>
    %76 = arith.mulf %74, %75 : vector<1x128xf32>
    %cst_34 = arith.constant 9.99999974E-6 : f32
    %77 = vector.broadcast %cst_34 : f32 to vector<1x128xf32>
    %78 = arith.addf %76, %77 : vector<1x128xf32>
    %79 = math.rsqrt %78 : vector<1x128xf32>
    %80 = arith.mulf %1, %79 : vector<1x128xf32>
    %81 = vector.broadcast %80 : vector<1x128xf32> to vector<8x128xf32>
    %82 = arith.mulf %71, %81 : vector<8x128xf32>
    %83 = vector.broadcast %2 : vector<1x128xf32> to vector<8x128xf32>
    %84 = arith.addf %82, %83 : vector<8x128xf32>
    %cst_35 = arith.constant 5.000000e-01 : f32
    %85 = vector.broadcast %cst_35 : f32 to vector<8x128xf32>
    %86 = arith.mulf %85, %84 : vector<8x128xf32>
    %87 = math.tanh %86 : vector<8x128xf32>
    %cst_36 = arith.constant 5.000000e-01 : f32
    %88 = vector.broadcast %cst_36 : f32 to vector<8x128xf32>
    %89 = arith.mulf %88, %87 : vector<8x128xf32>
    %cst_37 = arith.constant 5.000000e-01 : f32
    %90 = vector.broadcast %cst_37 : f32 to vector<8x128xf32>
    %91 = arith.addf %90, %89 : vector<8x128xf32>
    %92 = arith.mulf %84, %91 : vector<8x128xf32>
    %93 = arith.addf %0, %92 : vector<8x128xf32>
    %c0_38 = arith.constant 0 : index
    %c0_39 = arith.constant 0 : index
    %94 = vector.load %arg4[%c0_38, %c0_39] : memref<8x128xf32, #tpu.memory_space<vmem>>, vector<8x128xf32>
    tpu.vector_store %arg4[%c0_38, %c0_39], %93 {strides = array<i32>} : memref<8x128xf32, #tpu.memory_space<vmem>>, vector<8x128xf32>,
    return
  }
}

</mosaic_0001>

<llo_original>
// kernel: tpu_custom_call.1
$region0: #{tpu_custom_call.1}
  #allocation0 [shape = 'u32[]', space=smem, size = 0x4, offset = 0x4, fixed_abs, tag = 'smem constant byte address 0x4 - core index']
  #allocation1 [shape = 'u32[144,128]{1,0:T(1,128)}', space=vmem, size = 0x12000, scoped, tag = 'internal scratch']
  %s0 = inlined_call_operand.hbm [shape: f32[8,128], index: 0, kind: input, shape index: {}]
  %s1 = inlined_call_operand.hbm [shape: f32[3,128,128], index: 1, kind: input, shape index: {}]
  %s2 = inlined_call_operand.vmem [shape: f32[1,128], index: 2, kind: input, shape index: {}]
  %s3 = inlined_call_operand.vmem [shape: f32[1,128], index: 3, kind: input, shape index: {}]
  %s4 = inlined_call_operand.hbm [shape: f32[8,128], index: 4, kind: output, shape index: {}]
  %s5 = sld [smem:[#allocation0]]
  $region34: #{tpu_custom_call.1} parent=0
    _
  %s7 = ssub.s32 1, %s5
  %s8 = scalar_select 0, %s7, %s5
  $region1: #{tpu_custom_call.1} parent=0
    #allocation2 [shape = 'u8[4096]{0}', space=vmem, size = 0x1000, scoped, tag = 'input window, operand 0, single buffered']
    #allocation3 [shape = 's32[1]{0}', space=sflag, size = 0x4, scoped, tag = 'scoped memory for tpu_custom_call.1']
    #allocation4 [shape = 's32[1]{0}', space=sflag, size = 0x4, scoped, tag = 'scoped memory for tpu_custom_call.1']
    #allocation5 [shape = 'u8[196608]{0}', space=vmem, size = 0x30000, scoped, tag = 'input window, operand 1, single buffered']
    #allocation6 [shape = 's32[1]{0}', space=sflag, size = 0x4, scoped, tag = 'scoped memory for tpu_custom_call.1']
    #allocation7 [shape = 'u8[4096]{0}', space=vmem, size = 0x1000, scoped, tag = 'output window, operand 0, single buffered']
    %9 = vsyncpa [#allocation3], 0
    %10 = vsyncpa [#allocation6], 0
    %11 = vsyncpa [#allocation4], 0
    // Predicated region
    $region2: #{tpu_custom_call.1} parent=1 // pred_check
      _
    $region3: #{tpu_custom_call.1} parent=1 // pred_check_branch
      %13 = sbr.rel (0) target = $region5
    $region4: #{tpu_custom_call.1} parent=1 // pred_region
      %s15 = ssub.s32 128, 128
      %16 = vsyncadd [#allocation3], %s15
      %s18 = sshll.u32 [#allocation2], 4
      %s19 = int_to_ptr.vmem [resolvable:$true] %s18
      %21 = dma.hbm_to_vmem [thread:$0]  %s0, 128, %s19, [#allocation3]
    $region5: #{tpu_custom_call.1} parent=1 // pred_fallthru
      _
    // Predicated region
    $region6: #{tpu_custom_call.1} parent=1 // pred_check
      _
    $region7: #{tpu_custom_call.1} parent=1 // pred_check_branch
      %23 = sbr.rel (0) target = $region9
    $region8: #{tpu_custom_call.1} parent=1 // pred_region
      %s25 = ssub.s32 6144, 6144
      %26 = vsyncadd [#allocation6], %s25
      %s27 = sshll.u32 [#allocation5], 4
      %s28 = int_to_ptr.vmem [resolvable:$true] %s27
      %33 = dma.hbm_to_vmem [thread:$0]  %s1, 6144, %s28, [#allocation6], 128, 128, 8
    $region9: #{tpu_custom_call.1} parent=1 // pred_fallthru
      _
    // Predicated region
    $region10: #{tpu_custom_call.1} parent=1 // pred_check
      _
    $region11: #{tpu_custom_call.1} parent=1 // pred_check_branch
      %35 = sbr.rel (0) target = $region13
    $region12: #{tpu_custom_call.1} parent=1 // pred_region
      _
    $region13: #{tpu_custom_call.1} parent=1 // pred_fallthru
      _
    // Predicated region
    $region14: #{tpu_custom_call.1} parent=1 // pred_check
      _
    $region15: #{tpu_custom_call.1} parent=1 // pred_check_branch
      %37 = sbr.rel (0) target = $region17
    $region16: #{tpu_custom_call.1} parent=1 // pred_region
      _
    $region17: #{tpu_custom_call.1} parent=1 // pred_fallthru
      _
    // Predicated region
    $region18: #{tpu_custom_call.1} parent=1 // pred_check
      _
    $region19: #{tpu_custom_call.1} parent=1 // pred_check_branch
      %39 = sbr.rel (0) target = $region21
    $region20: #{tpu_custom_call.1} parent=1 // pred_region
      %40 = dma.done [#allocation3], 128
    $region21: #{tpu_custom_call.1} parent=1 // pred_fallthru
      _
    // Predicated region
    $region22: #{tpu_custom_call.1} parent=1 // pred_check
      _
    $region23: #{tpu_custom_call.1} parent=1 // pred_check_branch
      %42 = sbr.rel (0) target = $region25
    $region24: #{tpu_custom_call.1} parent=1 // pred_region
      %43 = dma.done [#allocation6], 6144
    $region25: #{tpu_custom_call.1} parent=1 // pred_fallthru
      _
    %v44 = vld [vmem:[#allocation2] sm:$0xff]
    %v45 = vld [vmem:[%s2] sm:$0x1]
    %v46 = vld [vmem:[%s3] sm:$0x1]
    %v47 = vld [vmem:[#allocation5] sm:$0xff]
    %v48 = vld [vmem:[#allocation5 + $0x8] sm:$0xff]
    %v49 = vld [vmem:[#allocation5 + $0x10] sm:$0xff]
    %v50 = vld [vmem:[#allocation5 + $0x18] sm:$0xff]
    %v51 = vld [vmem:[#allocation5 + $0x20] sm:$0xff]
    %v52 = vld [vmem:[#allocation5 + $0x28] sm:$0xff]
    %v53 = vld [vmem:[#allocation5 + $0x30] sm:$0xff]
    %v54 = vld [vmem:[#allocation5 + $0x38] sm:$0xff]
    %v55 = vld [vmem:[#allocation5 + $0x40] sm:$0xff]
    %v56 = vld [vmem:[#allocation5 + $0x48] sm:$0xff]
    %v57 = vld [vmem:[#allocation5 + $0x50] sm:$0xff]
    %v58 = vld [vmem:[#allocation5 + $0x58] sm:$0xff]
    %v59 = vld [vmem:[#allocation5 + $0x60] sm:$0xff]
    %v60 = vld [vmem:[#allocation5 + $0x68] sm:$0xff]
    %v61 = vld [vmem:[#allocation5 + $0x70] sm:$0xff]
    %v62 = vld [vmem:[#allocation5 + $0x78] sm:$0xff]
    %63 = vmatprep.subr.mxu0 0.0
    %64 = vmatpush1.msra.mxu0 %v47
    %65 = vmatprep.subr.mxu0 0.0
    %66 = vmatpush1.msra.mxu0 %v48
    %67 = vmatprep.subr.mxu0 0.0
    %68 = vmatpush1.msra.mxu0 %v49
    %69 = vmatprep.subr.mxu0 0.0
    %70 = vmatpush1.msra.mxu0 %v50
    %71 = vmatprep.subr.mxu0 0.0
    %72 = vmatpush1.msra.mxu0 %v51
    %73 = vmatprep.subr.mxu0 0.0
    %74 = vmatpush1.msra.mxu0 %v52
    %75 = vmatprep.subr.mxu0 0.0
    %76 = vmatpush1.msra.mxu0 %v53
    %77 = vmatprep.subr.mxu0 0.0
    %78 = vmatpush1.msra.mxu0 %v54
    %79 = vmatprep.subr.mxu0 0.0
    %80 = vmatpush1.msra.mxu0 %v55
    %81 = vmatprep.subr.mxu0 0.0
    %82 = vmatpush1.msra.mxu0 %v56
    %83 = vmatprep.subr.mxu0 0.0
    %84 = vmatpush1.msra.mxu0 %v57
    %85 = vmatprep.subr.mxu0 0.0
    %86 = vmatpush1.msra.mxu0 %v58
    %87 = vmatprep.subr.mxu0 0.0
    %88 = vmatpush1.msra.mxu0 %v59
    %89 = vmatprep.subr.mxu0 0.0
    %90 = vmatpush1.msra.mxu0 %v60
    %91 = vmatprep.subr.mxu0 0.0
    %92 = vmatpush1.msra.mxu0 %v61
    %93 = vmatprep.subr.mxu0 0.0
    %94 = vmatpush1.msra.mxu0 %v62
    %95 = vmatprep.subr.mxu0 0.0
    %96 = vmatpush1.msra.mxu0 0.0
    %97 = vmatprep.subr.mxu0 0.0
    %98 = vmatpush1.msra.mxu0 0.0
    %99 = vmatprep.subr.mxu0 0.0
    %100 = vmatpush1.msra.mxu0 0.0
    %101 = vmatprep.subr.mxu0 0.0
    %102 = vmatpush1.msra.mxu0 0.0
    %103 = vmatprep.subr.mxu0 0.0
    %104 = vmatpush1.msra.mxu0 0.0
    %105 = vmatprep.subr.mxu0 0.0
    %106 = vmatpush1.msra.mxu0 0.0
    %107 = vmatprep.subr.mxu0 0.0
    %108 = vmatpush1.msra.mxu0 0.0
    %109 = vmatprep.subr.mxu0 0.0
    %110 = vmatpush1.msra.mxu0 0.0
    %111 = vmatprep.subr.mxu0 0.0
    %112 = vmatpush1.msra.mxu0 0.0
    %113 = vmatprep.subr.mxu0 0.0
    %114 = vmatpush1.msra.mxu0 0.0
    %115 = vmatprep.subr.mxu0 0.0
    %116 = vmatpush1.msra.mxu0 0.0
    %117 = vmatprep.subr.mxu0 0.0
    %118 = vmatpush1.msra.mxu0 0.0
    %119 = vmatprep.subr.mxu0 0.0
    %120 = vmatpush1.msra.mxu0 0.0
    %121 = vmatprep.subr.mxu0 0.0
    %122 = vmatpush1.msra.mxu0 0.0
    %123 = vmatprep.subr.mxu0 0.0
    %124 = vmatpush1.msra.mxu0 0.0
    %125 = vmatprep.subr.mxu0 0.0
    %126 = vmatpush1.msra.mxu0 0.0
    %127 = vmatprep.mubr.f32.mxu0 0.0
    %128 = vmatmul.mubr.f32.gmra.mrb[0].mxu0 %v44
    %v129 = vpop.f32.mrb[0].mxu0
    %v130 = vadd.f32 0.0, %v129
    %v131 = vpop.f32.mrb[0].mxu0
    %132 = vdwg.mxu0
    %v133 = vrot.slane %v130, 4
    %v134 = vadd.f32 %v130, %v133
    %v135 = vrot.slane %v134, 2
    %v136 = vadd.f32 %v134, %v135
    %v137 = vrot.slane %v136, 1
    %v138 = vadd.f32 %v136, %v137
    %v139 = vmul.f32 %v138, 0.125
    %v140 = vsub.f32 %v130, %v139
    %v141 = vmul.f32 %v140, %v140
    %v142 = vrot.slane %v141, 4
    %v143 = vadd.f32 %v141, %v142
    %v144 = vrot.slane %v143, 2
    %v145 = vadd.f32 %v143, %v144
    %v146 = vrot.slane %v145, 1
    %v147 = vadd.f32 %v145, %v146
    %v148 = vmul.f32 %v147, 0.125
    %v149 = vadd.f32 %v148, 1e-05
    %v150 = vrsqrt.pop %v149
    %v151 = vmul.f32 %v45, %v150
    %v153 = vlaneseq
    %v154 = vshrl.u32 %v153, 7
    %v155 = vsub.s32 0, %v154
    %v156 = vrot.slane %v151, %v155
    %v158 = vmul.f32 %v140, %v156
    %v160 = vlaneseq
    %v161 = vshrl.u32 %v160, 7
    %v162 = vsub.s32 0, %v161
    %v163 = vrot.slane %v46, %v162
    %v165 = vadd.f32 %v158, %v163
    %v166 = vmul.f32 %v165, 0.5
    %v167 = vtanh.pop %v166
    %v168 = vmul.f32 %v167, 0.5
    %v169 = vadd.f32 %v168, 0.5
    %v170 = vmul.f32 %v165, %v169
    %s171 = scalar_lea.vmem [#allocation5], 128
    %v172 = vld [vmem:[%s171] sm:$0xff]
    %v173 = vld [vmem:[%s171 + $0x8] sm:$0xff]
    %v174 = vld [vmem:[%s171 + $0x10] sm:$0xff]
    %v175 = vld [vmem:[%s171 + $0x18] sm:$0xff]
    %v176 = vld [vmem:[%s171 + $0x20] sm:$0xff]
    %v177 = vld [vmem:[%s171 + $0x28] sm:$0xff]
    %v178 = vld [vmem:[%s171 + $0x30] sm:$0xff]
    %v179 = vld [vmem:[%s171 + $0x38] sm:$0xff]
    %v180 = vld [vmem:[%s171 + $0x40] sm:$0xff]
    %v181 = vld [vmem:[%s171 + $0x48] sm:$0xff]
    %v182 = vld [vmem:[%s171 + $0x50] sm:$0xff]
    %v183 = vld [vmem:[%s171 + $0x58] sm:$0xff]
    %v184 = vld [vmem:[%s171 + $0x60] sm:$0xff]
    %v185 = vld [vmem:[%s171 + $0x68] sm:$0xff]
    %v186 = vld [vmem:[%s171 + $0x70] sm:$0xff]
    %v187 = vld [vmem:[%s171 + $0x78] sm:$0xff]
    %188 = vmatprep.subr.mxu0 0.0
    %189 = vmatpush1.msra.mxu0 %v172
    %190 = vmatprep.subr.mxu0 0.0
    %191 = vmatpush1.msra.mxu0 %v173
    %192 = vmatprep.subr.mxu0 0.0
    %193 = vmatpush1.msra.mxu0 %v174
    %194 = vmatprep.subr.mxu0 0.0
    %195 = vmatpush1.msra.mxu0 %v175
    %196 = vmatprep.subr.mxu0 0.0
    %197 = vmatpush1.msra.mxu0 %v176
    %198 = vmatprep.subr.mxu0 0.0
    %199 = vmatpush1.msra.mxu0 %v177
    %200 = vmatprep.subr.mxu0 0.0
    %201 = vmatpush1.msra.mxu0 %v178
    %202 = vmatprep.subr.mxu0 0.0
    %203 = vmatpush1.msra.mxu0 %v179
    %204 = vmatprep.subr.mxu0 0.0
    %205 = vmatpush1.msra.mxu0 %v180
    %206 = vmatprep.subr.mxu0 0.0
    %207 = vmatpush1.msra.mxu0 %v181
    %208 = vmatprep.subr.mxu0 0.0
    %209 = vmatpush1.msra.mxu0 %v182
    %210 = vmatprep.subr.mxu0 0.0
    %211 = vmatpush1.msra.mxu0 %v183
    %212 = vmatprep.subr.mxu0 0.0
    %213 = vmatpush1.msra.mxu0 %v184
    %214 = vmatprep.subr.mxu0 0.0
    %215 = vmatpush1.msra.mxu0 %v185
    %216 = vmatprep.subr.mxu0 0.0
    %217 = vmatpush1.msra.mxu0 %v186
    %218 = vmatprep.subr.mxu0 0.0
    %219 = vmatpush1.msra.mxu0 %v187
    %220 = vmatprep.subr.mxu0 0.0
    %221 = vmatpush1.msra.mxu0 0.0
    %222 = vmatprep.subr.mxu0 0.0
    %223 = vmatpush1.msra.mxu0 0.0
    %224 = vmatprep.subr.mxu0 0.0
    %225 = vmatpush1.msra.mxu0 0.0
    %226 = vmatprep.subr.mxu0 0.0
    %227 = vmatpush1.msra.mxu0 0.0
    %228 = vmatprep.subr.mxu0 0.0
    %229 = vmatpush1.msra.mxu0 0.0
    %230 = vmatprep.subr.mxu0 0.0
    %231 = vmatpush1.msra.mxu0 0.0
    %232 = vmatprep.subr.mxu0 0.0
    %233 = vmatpush1.msra.mxu0 0.0
    %234 = vmatprep.subr.mxu0 0.0
    %235 = vmatpush1.msra.mxu0 0.0
    %236 = vmatprep.subr.mxu0 0.0
    %237 = vmatpush1.msra.mxu0 0.0
    %238 = vmatprep.subr.mxu0 0.0
    %239 = vmatpush1.msra.mxu0 0.0
    %240 = vmatprep.subr.mxu0 0.0
    %241 = vmatpush1.msra.mxu0 0.0
    %242 = vmatprep.subr.mxu0 0.0
    %243 = vmatpush1.msra.mxu0 0.0
    %244 = vmatprep.subr.mxu0 0.0
    %245 = vmatpush1.msra.mxu0 0.0
    %246 = vmatprep.subr.mxu0 0.0
    %247 = vmatpush1.msra.mxu0 0.0
    %248 = vmatprep.subr.mxu0 0.0
    %249 = vmatpush1.msra.mxu0 0.0
    %250 = vmatprep.subr.mxu0 0.0
    %251 = vmatpush1.msra.mxu0 0.0
    %252 = vmatprep.mubr.f32.mxu0 0.0
    %253 = vmatmul.mubr.f32.gmra.mrb[0].mxu0 %v170
    %v254 = vpop.f32.mrb[0].mxu0
    %v255 = vadd.f32 0.0, %v254
    %v256 = vpop.f32.mrb[0].mxu0
    %257 = vdwg.mxu0
    %v258 = vrot.slane %v255, 4
    %v259 = vadd.f32 %v255, %v258
    %v260 = vrot.slane %v259, 2
    %v261 = vadd.f32 %v259, %v260
    %v262 = vrot.slane %v261, 1
    %v263 = vadd.f32 %v261, %v262
    %v264 = vmul.f32 %v263, 0.125
    %v265 = vsub.f32 %v255, %v264
    %v266 = vmul.f32 %v265, %v265
    %v267 = vrot.slane %v266, 4
    %v268 = vadd.f32 %v266, %v267
    %v269 = vrot.slane %v268, 2
    %v270 = vadd.f32 %v268, %v269
    %v271 = vrot.slane %v270, 1
    %v272 = vadd.f32 %v270, %v271
    %v273 = vmul.f32 %v272, 0.125
    %v274 = vadd.f32 %v273, 1e-05
    %v275 = vrsqrt.pop %v274
    %v276 = vmul.f32 %v45, %v275
    %v278 = vlaneseq
    %v279 = vshrl.u32 %v278, 7
    %v280 = vsub.s32 0, %v279
    %v281 = vrot.slane %v276, %v280
    %v283 = vmul.f32 %v265, %v281
    %v284 = vadd.f32 %v283, %v163
    %v285 = vmul.f32 %v284, 0.5
    %v286 = vtanh.pop %v285
    %v287 = vmul.f32 %v286, 0.5
    %v288 = vadd.f32 %v287, 0.5
    %v289 = vmul.f32 %v284, %v288
    %s290 = scalar_lea.vmem [#allocation5], 256
    %v291 = vld [vmem:[%s290] sm:$0xff]
    %v292 = vld [vmem:[%s290 + $0x8] sm:$0xff]
    %v293 = vld [vmem:[%s290 + $0x10] sm:$0xff]
    %v294 = vld [vmem:[%s290 + $0x18] sm:$0xff]
    %v295 = vld [vmem:[%s290 + $0x20] sm:$0xff]
    %v296 = vld [vmem:[%s290 + $0x28] sm:$0xff]
    %v297 = vld [vmem:[%s290 + $0x30] sm:$0xff]
    %v298 = vld [vmem:[%s290 + $0x38] sm:$0xff]
    %v299 = vld [vmem:[%s290 + $0x40] sm:$0xff]
    %v300 = vld [vmem:[%s290 + $0x48] sm:$0xff]
    %v301 = vld [vmem:[%s290 + $0x50] sm:$0xff]
    %v302 = vld [vmem:[%s290 + $0x58] sm:$0xff]
    %v303 = vld [vmem:[%s290 + $0x60] sm:$0xff]
    %v304 = vld [vmem:[%s290 + $0x68] sm:$0xff]
    %v305 = vld [vmem:[%s290 + $0x70] sm:$0xff]
    %v306 = vld [vmem:[%s290 + $0x78] sm:$0xff]
    %307 = vmatprep.subr.mxu0 0.0
    %308 = vmatpush1.msra.mxu0 %v291
    %309 = vmatprep.subr.mxu0 0.0
    %310 = vmatpush1.msra.mxu0 %v292
    %311 = vmatprep.subr.mxu0 0.0
    %312 = vmatpush1.msra.mxu0 %v293
    %313 = vmatprep.subr.mxu0 0.0
    %314 = vmatpush1.msra.mxu0 %v294
    %315 = vmatprep.subr.mxu0 0.0
    %316 = vmatpush1.msra.mxu0 %v295
    %317 = vmatprep.subr.mxu0 0.0
    %318 = vmatpush1.msra.mxu0 %v296
    %319 = vmatprep.subr.mxu0 0.0
    %320 = vmatpush1.msra.mxu0 %v297
    %321 = vmatprep.subr.mxu0 0.0
    %322 = vmatpush1.msra.mxu0 %v298
    %323 = vmatprep.subr.mxu0 0.0
    %324 = vmatpush1.msra.mxu0 %v299
    %325 = vmatprep.subr.mxu0 0.0
    %326 = vmatpush1.msra.mxu0 %v300
    %327 = vmatprep.subr.mxu0 0.0
    %328 = vmatpush1.msra.mxu0 %v301
    %329 = vmatprep.subr.mxu0 0.0
    %330 = vmatpush1.msra.mxu0 %v302
    %331 = vmatprep.subr.mxu0 0.0
    %332 = vmatpush1.msra.mxu0 %v303
    %333 = vmatprep.subr.mxu0 0.0
    %334 = vmatpush1.msra.mxu0 %v304
    %335 = vmatprep.subr.mxu0 0.0
    %336 = vmatpush1.msra.mxu0 %v305
    %337 = vmatprep.subr.mxu0 0.0
    %338 = vmatpush1.msra.mxu0 %v306
    %339 = vmatprep.subr.mxu0 0.0
    %340 = vmatpush1.msra.mxu0 0.0
    %341 = vmatprep.subr.mxu0 0.0
    %342 = vmatpush1.msra.mxu0 0.0
    %343 = vmatprep.subr.mxu0 0.0
    %344 = vmatpush1.msra.mxu0 0.0
    %345 = vmatprep.subr.mxu0 0.0
    %346 = vmatpush1.msra.mxu0 0.0
    %347 = vmatprep.subr.mxu0 0.0
    %348 = vmatpush1.msra.mxu0 0.0
    %349 = vmatprep.subr.mxu0 0.0
    %350 = vmatpush1.msra.mxu0 0.0
    %351 = vmatprep.subr.mxu0 0.0
    %352 = vmatpush1.msra.mxu0 0.0
    %353 = vmatprep.subr.mxu0 0.0
    %354 = vmatpush1.msra.mxu0 0.0
    %355 = vmatprep.subr.mxu0 0.0
    %356 = vmatpush1.msra.mxu0 0.0
    %357 = vmatprep.subr.mxu0 0.0
    %358 = vmatpush1.msra.mxu0 0.0
    %359 = vmatprep.subr.mxu0 0.0
    %360 = vmatpush1.msra.mxu0 0.0
    %361 = vmatprep.subr.mxu0 0.0
    %362 = vmatpush1.msra.mxu0 0.0
    %363 = vmatprep.subr.mxu0 0.0
    %364 = vmatpush1.msra.mxu0 0.0
    %365 = vmatprep.subr.mxu0 0.0
    %366 = vmatpush1.msra.mxu0 0.0
    %367 = vmatprep.subr.mxu0 0.0
    %368 = vmatpush1.msra.mxu0 0.0
    %369 = vmatprep.subr.mxu0 0.0
    %370 = vmatpush1.msra.mxu0 0.0
    %371 = vmatprep.mubr.f32.mxu0 0.0
    %372 = vmatmul.mubr.f32.gmra.mrb[0].mxu0 %v289
    %v373 = vpop.f32.mrb[0].mxu0
    %v374 = vadd.f32 0.0, %v373
    %v375 = vpop.f32.mrb[0].mxu0
    %376 = vdwg.mxu0
    %v377 = vrot.slane %v374, 4
    %v378 = vadd.f32 %v374, %v377
    %v379 = vrot.slane %v378, 2
    %v380 = vadd.f32 %v378, %v379
    %v381 = vrot.slane %v380, 1
    %v382 = vadd.f32 %v380, %v381
    %v383 = vmul.f32 %v382, 0.125
    %v384 = vsub.f32 %v374, %v383
    %v385 = vmul.f32 %v384, %v384
    %v386 = vrot.slane %v385, 4
    %v387 = vadd.f32 %v385, %v386
    %v388 = vrot.slane %v387, 2
    %v389 = vadd.f32 %v387, %v388
    %v390 = vrot.slane %v389, 1
    %v391 = vadd.f32 %v389, %v390
    %v392 = vmul.f32 %v391, 0.125
    %v393 = vadd.f32 %v392, 1e-05
    %v394 = vrsqrt.pop %v393
    %v395 = vmul.f32 %v45, %v394
    %v397 = vlaneseq
    %v398 = vshrl.u32 %v397, 7
    %v399 = vsub.s32 0, %v398
    %v400 = vrot.slane %v395, %v399
    %v402 = vmul.f32 %v384, %v400
    %v403 = vadd.f32 %v402, %v163
    %v404 = vmul.f32 %v403, 0.5
    %v405 = vtanh.pop %v404
    %v406 = vmul.f32 %v405, 0.5
    %v407 = vadd.f32 %v406, 0.5
    %v408 = vmul.f32 %v403, %v407
    %v409 = vadd.f32 %v44, %v408
    %410 = vst [vmem:[#allocation7] sm:$0xff] %v409
    // Predicated region
    $region26: #{tpu_custom_call.1} parent=1 // pred_check
      _
    $region27: #{tpu_custom_call.1} parent=1 // pred_check_branch
      %412 = sbr.rel (0) target = $region29
    $region28: #{tpu_custom_call.1} parent=1 // pred_region
      %s414 = ssub.s32 128, 128
      %415 = vsyncadd [#allocation4], %s414
      %s417 = sshll.u32 [#allocation7], 4
      %s418 = int_to_ptr.vmem [resolvable:$true] %s417
      %420 = dma.vmem_to_hbm [thread:$0]  %s418, 128, %s4, [#allocation4]
    $region29: #{tpu_custom_call.1} parent=1 // pred_fallthru
      _
    // Predicated region
    $region30: #{tpu_custom_call.1} parent=1 // pred_check
      _
    $region31: #{tpu_custom_call.1} parent=1 // pred_check_branch
      %422 = sbr.rel (0) target = $region33
    $region32: #{tpu_custom_call.1} parent=1 // pred_region
      %423 = dma.done [#allocation4], 128
    $region33: #{tpu_custom_call.1} parent=1 // pred_fallthru
      _
    %424 = vsyncpa [#allocation3], 1
    %425 = vsyncpa [#allocation6], 1
    %426 = vsyncpa [#allocation4], 1

</llo_original>
